<compile_context>
chip_gen: v7x
topology: tpu7x:2x2x1
jax: 0.10.0
libtpu: 0.0.40
codegen_flags: <defaults>
</compile_context>

<pallas_src>
import jax
import jax.numpy as jnp
from jax.experimental import pallas as pl
from jax.experimental.pallas import tpu as pltpu


def _sa_classifier_kernel(x_ref, w1_ref, b1_ref, w2_ref, b2_ref, out_ref):
    # x:  (TB, D_in)    bf16   (batch on sublanes, features on lanes)
    # w1: (D_in, 256)   bf16   b1: (1, 256) f32
    # w2: (256, 2)      f32    b2: (1, 2)   f32
    # out:(TB, 2)       f32
    h = jnp.dot(x_ref[...], w1_ref[...], preferred_element_type=jnp.float32)
    h = jnp.maximum(h + b1_ref[...], 0.0)  # fused bias + ReLU in f32
    logits = jnp.dot(h, w2_ref[...], preferred_element_type=jnp.float32) + b2_ref[...]
    out_ref[...] = logits.astype(out_ref.dtype)


def sa_classifier_forward(sa_input, w1, b1, w2, b2, *, block_b=512):
    """Pallas forward. sa_input: (B, state_dim+action_dim) f32 -> (B, 2) f32 logits."""
    B, d_in = sa_input.shape
    hidden = w1.shape[1]
    out_dim = w2.shape[1]

    # Biases as 2-D rows (no-op if already pre-shaped at param creation).
    b1_2d = b1.reshape(1, hidden).astype(jnp.float32)
    b2_2d = b2.reshape(1, out_dim).astype(jnp.float32)

    # bf16 the dominant HBM read stream; accumulation stays f32 on the MXU.
    x_bf16 = sa_input.astype(jnp.bfloat16)
    w1_bf16 = w1.astype(jnp.bfloat16)

    # Batch tile: multiple of 8 (sublane) or the full batch; Pallas masks the tail tile.
    tb = min(block_b, B)
    if tb != B and tb % 8 != 0:
        tb = B
    grid = (pl.cdiv(B, tb),)

    return pl.pallas_call(
        _sa_classifier_kernel,
        out_shape=jax.ShapeDtypeStruct((B, out_dim), jnp.float32),
        grid=grid,
        in_specs=[
            pl.BlockSpec((tb, d_in), lambda i: (i, 0)),         # x: streamed per batch tile
            pl.BlockSpec((d_in, hidden), lambda i: (0, 0)),     # w1: VMEM-resident
            pl.BlockSpec((1, hidden), lambda i: (0, 0)),        # b1: VMEM-resident
            pl.BlockSpec((hidden, out_dim), lambda i: (0, 0)),  # w2: VMEM-resident
            pl.BlockSpec((1, out_dim), lambda i: (0, 0)),       # b2: VMEM-resident
        ],
        out_specs=pl.BlockSpec((tb, out_dim), lambda i: (i, 0)),
        compiler_params=pltpu.CompilerParams(
            # v7x: shard independent batch tiles across both TensorCores (no-op on v5e/v6e).
            dimension_semantics=("parallel",),
        ),
    )(x_bf16, w1_bf16, b1_2d, w2.astype(jnp.float32), b2_2d)


def init_params(key, state_dim, action_dim, hidden=256, out_dim=2):
    """nn.Linear-style init (uniform(-1/sqrt(fan_in), 1/sqrt(fan_in))); biases pre-shaped 2-D."""
    in_dim = state_dim + action_dim
    k1, k2, k3, k4 = jax.random.split(key, 4)
    bound1 = 1.0 / jnp.sqrt(jnp.float32(in_dim))
    bound2 = 1.0 / jnp.sqrt(jnp.float32(hidden))
    w1 = jax.random.uniform(k1, (in_dim, hidden), jnp.float32, -bound1, bound1)
    b1 = jax.random.uniform(k2, (1, hidden), jnp.float32, -bound1, bound1)
    w2 = jax.random.uniform(k3, (hidden, out_dim), jnp.float32, -bound2, bound2)
    b2 = jax.random.uniform(k4, (1, out_dim), jnp.float32, -bound2, bound2)
    return w1, b1, w2, b2


if __name__ == "__main__":
    key = jax.random.PRNGKey(0)
    state_dim, action_dim, batch = 12, 4, 8

    k_params, k_x = jax.random.split(key)
    w1, b1, w2, b2 = init_params(k_params, state_dim, action_dim)
    sa_input = jax.random.normal(k_x, (batch, state_dim + action_dim), jnp.float32)

    logits = sa_classifier_forward(sa_input, w1, b1, w2, b2)
    jax.block_until_ready(logits)

    # Reference in plain JAX at the same (bf16-input, f32-accumulate) precision.
    x_bf = sa_input.astype(jnp.bfloat16)
    w1_bf = w1.astype(jnp.bfloat16)
    h_ref = jnp.maximum(
        jnp.dot(x_bf, w1_bf, preferred_element_type=jnp.float32) + b1, 0.0
    )
    ref = jnp.dot(h_ref, w2, preferred_element_type=jnp.float32) + b2

    assert logits.shape == (batch, 2)
    assert jnp.allclose(logits, ref, atol=2e-2, rtol=2e-2), (
        f"max abs err = {jnp.max(jnp.abs(logits - ref))}"
    )

    print("KERNEL_OK")
</pallas_src>

<mosaic_0001>
module attributes {stable_mosaic.version = 11 : i64} {
  func.func @_sa_classifier_kernel(%arg0: i32, %arg1: memref<8x16xbf16, #tpu.memory_space<vmem>>, %arg2: memref<16x256xbf16, #tpu.memory_space<vmem>>, %arg3: memref<1x256xf32, #tpu.memory_space<vmem>>, %arg4: memref<256x2xf32, #tpu.memory_space<vmem>>, %arg5: memref<1x2xf32, #tpu.memory_space<vmem>>, %arg6: memref<8x2xf32, #tpu.memory_space<vmem>>) attributes {dimension_semantics = [#tpu.dimension_semantics<parallel>], iteration_bounds = array<i64: 1>, scalar_prefetch = 0 : i64, scratch_operands = 0 : i64, tpu.core_type = #tpu.core_type<tc>, window_params = [{transform_indices = @transform_0, window_bounds = array<i64: 8, 16>}, {pipeline_mode = #tpu.pipeline_mode<synchronous>, transform_indices = @transform_1, window_bounds = array<i64: 16, 256>}, {pipeline_mode = #tpu.pipeline_mode<synchronous>, transform_indices = @transform_2, window_bounds = array<i64: 1, 256>}, {pipeline_mode = #tpu.pipeline_mode<synchronous>, transform_indices = @transform_3, window_bounds = array<i64: 256, 2>}, {pipeline_mode = #tpu.pipeline_mode<synchronous>, transform_indices = @transform_4, window_bounds = array<i64: 1, 2>}, {transform_indices = @transform_5, window_bounds = array<i64: 8, 2>}]} {
    %c0 = arith.constant 0 : index
    %c0_0 = arith.constant 0 : index
    %0 = vector.load %arg1[%c0, %c0_0] : memref<8x16xbf16, #tpu.memory_space<vmem>>, vector<8x16xbf16>
    %c0_1 = arith.constant 0 : index
    %c0_2 = arith.constant 0 : index
    %1 = vector.load %arg2[%c0_1, %c0_2] : memref<16x256xbf16, #tpu.memory_space<vmem>>, vector<16x256xbf16>
    %cst = arith.constant dense<0.000000e+00> : vector<8x256xf32>
    %2 = tpu.matmul %0, %1, %cst {dimension_numbers = #tpu.dot_dimension_numbers<[1], [0], [0], [1], [0, 0, 1, 1], [], []>} : vector<8x16xbf16>, vector<16x256xbf16>, vector<8x256xf32> -> vector<8x256xf32>
    %c0_3 = arith.constant 0 : index
    %c0_4 = arith.constant 0 : index
    %3 = vector.load %arg3[%c0_3, %c0_4] : memref<1x256xf32, #tpu.memory_space<vmem>>, vector<1x256xf32>
    %4 = vector.broadcast %3 : vector<1x256xf32> to vector<8x256xf32>
    %5 = arith.addf %2, %4 : vector<8x256xf32>
    %cst_5 = arith.constant 0.000000e+00 : f32
    %6 = vector.broadcast %cst_5 : f32 to vector<8x256xf32>
    %7 = arith.maximumf %5, %6 : vector<8x256xf32>
    %c0_6 = arith.constant 0 : index
    %c0_7 = arith.constant 0 : index
    %8 = vector.load %arg4[%c0_6, %c0_7] : memref<256x2xf32, #tpu.memory_space<vmem>>, vector<256x2xf32>
    %cst_8 = arith.constant dense<0.000000e+00> : vector<8x2xf32>
    %9 = tpu.matmul %7, %8, %cst_8 {dimension_numbers = #tpu.dot_dimension_numbers<[1], [0], [0], [1], [0, 0, 1, 1], [], []>} : vector<8x256xf32>, vector<256x2xf32>, vector<8x2xf32> -> vector<8x2xf32>
    %c0_9 = arith.constant 0 : index
    %c0_10 = arith.constant 0 : index
    %10 = vector.load %arg5[%c0_9, %c0_10] : memref<1x2xf32, #tpu.memory_space<vmem>>, vector<1x2xf32>
    %11 = vector.broadcast %10 : vector<1x2xf32> to vector<8x2xf32>
    %12 = arith.addf %9, %11 : vector<8x2xf32>
    %c0_11 = arith.constant 0 : index
    %c0_12 = arith.constant 0 : index
    %13 = vector.load %arg6[%c0_11, %c0_12] : memref<8x2xf32, #tpu.memory_space<vmem>>, vector<8x2xf32>
    tpu.vector_store %arg6[%c0_11, %c0_12], %12 {strides = array<i32>} : memref<8x2xf32, #tpu.memory_space<vmem>>, vector<8x2xf32>,
    return
  }
  func.func @transform_0(%arg0: i32) -> (i32, i32) {
    %c0_i32 = arith.constant 0 : i32
    %c0_i32_0 = arith.constant 0 : i32
    return %arg0, %c0_i32 : i32, i32
  }
  func.func @transform_1(%arg0: i32) -> (i32, i32) {
    %c0_i32 = arith.constant 0 : i32
    %c0_i32_0 = arith.constant 0 : i32
    %c0_i32_1 = arith.constant 0 : i32
    return %c0_i32, %c0_i32_0 : i32, i32
  }
  func.func @transform_2(%arg0: i32) -> (i32, i32) {
    %c0_i32 = arith.constant 0 : i32
    %c0_i32_0 = arith.constant 0 : i32
    %c0_i32_1 = arith.constant 0 : i32
    return %c0_i32, %c0_i32_0 : i32, i32
  }
  func.func @transform_3(%arg0: i32) -> (i32, i32) {
    %c0_i32 = arith.constant 0 : i32
    %c0_i32_0 = arith.constant 0 : i32
    %c0_i32_1 = arith.constant 0 : i32
    return %c0_i32, %c0_i32_0 : i32, i32
  }
  func.func @transform_4(%arg0: i32) -> (i32, i32) {
    %c0_i32 = arith.constant 0 : i32
    %c0_i32_0 = arith.constant 0 : i32
    %c0_i32_1 = arith.constant 0 : i32
    return %c0_i32, %c0_i32_0 : i32, i32
  }
  func.func @transform_5(%arg0: i32) -> (i32, i32) {
    %c0_i32 = arith.constant 0 : i32
    %c0_i32_0 = arith.constant 0 : i32
    return %arg0, %c0_i32 : i32, i32
  }
}

</mosaic_0001>

<llo_original>
// kernel: tpu_custom_call.1
$region0: #{tpu_custom_call.1}
  #allocation0 [shape = 'u32[]', space=smem, size = 0x4, offset = 0x4, fixed_abs, tag = 'smem constant byte address 0x4 - core index']
  #allocation1 [shape = 'u32[144,128]{1,0:T(1,128)}', space=vmem, size = 0x12000, scoped, tag = 'internal scratch']
  %s0 = inlined_call_operand.vmem [shape: bf16[8,16], index: 0, kind: input, shape index: {}]
  %s1 = inlined_call_operand.vmem [shape: bf16[16,256], index: 1, kind: input, shape index: {}]
  %s2 = inlined_call_operand.vmem [shape: f32[1,256], index: 2, kind: input, shape index: {}]
  %s3 = inlined_call_operand.vmem [shape: f32[256,2], index: 3, kind: input, shape index: {}]
  %s4 = inlined_call_operand.vmem [shape: f32[1,2], index: 4, kind: input, shape index: {}]
  %s5 = inlined_call_operand.vmem [shape: f32[8,2], index: 5, kind: output, shape index: {}]
  %s6 = sld [smem:[#allocation0]]
  $region30: #{tpu_custom_call.1} parent=0
    _
  %s8 = ssub.s32 1, %s6
  %s9 = scalar_select 0, %s8, %s6
  // Predicated region
  $region2: #{tpu_custom_call.1} parent=0 // pred_check
    _
  $region3: #{tpu_custom_call.1} parent=0 // pred_check_branch
    %11 = sbr.rel (0) target = $region5
  $region4: #{tpu_custom_call.1} parent=0 // pred_region
    _
  $region5: #{tpu_custom_call.1} parent=0 // pred_fallthru
    _
  // Predicated region
  $region6: #{tpu_custom_call.1} parent=0 // pred_check
    _
  $region7: #{tpu_custom_call.1} parent=0 // pred_check_branch
    %13 = sbr.rel (0) target = $region9
  $region8: #{tpu_custom_call.1} parent=0 // pred_region
    _
  $region9: #{tpu_custom_call.1} parent=0 // pred_fallthru
    _
  // Predicated region
  $region10: #{tpu_custom_call.1} parent=0 // pred_check
    _
  $region11: #{tpu_custom_call.1} parent=0 // pred_check_branch
    %15 = sbr.rel (0) target = $region13
  $region12: #{tpu_custom_call.1} parent=0 // pred_region
    _
  $region13: #{tpu_custom_call.1} parent=0 // pred_fallthru
    _
  // Predicated region
  $region14: #{tpu_custom_call.1} parent=0 // pred_check
    _
  $region15: #{tpu_custom_call.1} parent=0 // pred_check_branch
    %17 = sbr.rel (0) target = $region17
  $region16: #{tpu_custom_call.1} parent=0 // pred_region
    _
  $region17: #{tpu_custom_call.1} parent=0 // pred_fallthru
    _
  // Predicated region
  $region18: #{tpu_custom_call.1} parent=0 // pred_check
    _
  $region19: #{tpu_custom_call.1} parent=0 // pred_check_branch
    %19 = sbr.rel (0) target = $region21
  $region20: #{tpu_custom_call.1} parent=0 // pred_region
    _
  $region21: #{tpu_custom_call.1} parent=0 // pred_fallthru
    _
  %v21 = vld [vmem:[%s0] sm:$0xf]
  %v22 = vld [vmem:[%s1] sm:$0xff]
  %v23 = vld [vmem:[%s1 + $0x8] sm:$0xff]
  %v24 = vld [vmem:[%s2] sm:$0x3]
  %v26 = vlaneseq
  %v27 = vshrl.u32 %v26, 7
  %v28 = vsub.s32 0, %v27
  %v29 = vrot.slane %v24, %v28
  %v30 = vlaneseq
  %v31 = vshrl.u32 %v30, 7
  %v32 = vsub.s32 1, %v31
  %v33 = vrot.slane %v24, %v32
  %v38 = vunpack.c.l.b16 %v22
  %v39 = vunpack.c.h.b16 %v22
  %v40 = vunpack.c.l.b16 %v23
  %v41 = vunpack.c.h.b16 %v23
  %v42 = vpack.c.b16 %v40, %v38
  %v43 = vpack.c.b16 %v41, %v39
  %vm46 = vcmask 130048
  %v48 = vsel %vm46, %v21, 0
  %50 = vmatprep.subr.bf16.mxu0 %v43
  %51 = vmatpush1.bf16.msra.mxu0 %v42
  %52 = vmatprep.subr.bf16.mxu0 0
  %53 = vmatpush1.bf16.msra.mxu0 0
  %54 = vmatprep.subr.bf16.mxu0 0
  %55 = vmatpush1.bf16.msra.mxu0 0
  %56 = vmatprep.subr.bf16.mxu0 0
  %57 = vmatpush1.bf16.msra.mxu0 0
  %58 = vmatprep.subr.bf16.mxu0 0
  %59 = vmatpush1.bf16.msra.mxu0 0
  %60 = vmatprep.subr.bf16.mxu0 0
  %61 = vmatpush1.bf16.msra.mxu0 0
  %62 = vmatprep.subr.bf16.mxu0 0
  %63 = vmatpush1.bf16.msra.mxu0 0
  %64 = vmatprep.subr.bf16.mxu0 0
  %65 = vmatpush1.bf16.msra.mxu0 0
  %66 = vmatprep.subr.bf16.mxu0 0
  %67 = vmatpush1.bf16.msra.mxu0 0
  %68 = vmatprep.subr.bf16.mxu0 0
  %69 = vmatpush1.bf16.msra.mxu0 0
  %70 = vmatprep.subr.bf16.mxu0 0
  %71 = vmatpush1.bf16.msra.mxu0 0
  %72 = vmatprep.subr.bf16.mxu0 0
  %73 = vmatpush1.bf16.msra.mxu0 0
  %74 = vmatprep.subr.bf16.mxu0 0
  %75 = vmatpush1.bf16.msra.mxu0 0
  %76 = vmatprep.subr.bf16.mxu0 0
  %77 = vmatpush1.bf16.msra.mxu0 0
  %78 = vmatprep.subr.bf16.mxu0 0
  %79 = vmatpush1.bf16.msra.mxu0 0
  %80 = vmatprep.subr.bf16.mxu0 0
  %81 = vmatpush1.bf16.msra.mxu0 0
  %82 = vmatprep.mubr.bf16.mxu0 0
  %83 = vmatmul.mubr.bf16.gmra.mrb[0].mxu0 %v48
  %v84 = vpop.f32.mrb[0].mxu0
  %v85 = vadd.f32 %v29, %v84
  %v86 = vpop.f32.mrb[0].mxu0
  %v87 = vadd.f32 %v33, %v86
  %v88 = vpop.f32.mrb[0].mxu0
  %v89 = vpop.f32.mrb[0].mxu0
  %90 = vdwg.mxu0
  %v91 = vmax.f32 %v85, 0.0
  %v92 = vmax.f32 %v87, 0.0
  %v93 = vld [vmem:[%s3] sm:$0xff]
  %v94 = vld [vmem:[%s3 + $0x8] sm:$0xff]
  %v95 = vld [vmem:[%s3 + $0x10] sm:$0xff]
  %v96 = vld [vmem:[%s3 + $0x18] sm:$0xff]
  %v97 = vld [vmem:[%s3 + $0x20] sm:$0xff]
  %v98 = vld [vmem:[%s3 + $0x28] sm:$0xff]
  %v99 = vld [vmem:[%s3 + $0x30] sm:$0xff]
  %v100 = vld [vmem:[%s3 + $0x38] sm:$0xff]
  %v101 = vld [vmem:[%s3 + $0x40] sm:$0xff]
  %v102 = vld [vmem:[%s3 + $0x48] sm:$0xff]
  %v103 = vld [vmem:[%s3 + $0x50] sm:$0xff]
  %v104 = vld [vmem:[%s3 + $0x58] sm:$0xff]
  %v105 = vld [vmem:[%s3 + $0x60] sm:$0xff]
  %v106 = vld [vmem:[%s3 + $0x68] sm:$0xff]
  %v107 = vld [vmem:[%s3 + $0x70] sm:$0xff]
  %v108 = vld [vmem:[%s3 + $0x78] sm:$0xff]
  %v109 = vld [vmem:[%s3 + $0x80] sm:$0xff]
  %v110 = vld [vmem:[%s3 + $0x88] sm:$0xff]
  %v111 = vld [vmem:[%s3 + $0x90] sm:$0xff]
  %v112 = vld [vmem:[%s3 + $0x98] sm:$0xff]
  %v113 = vld [vmem:[%s3 + $0xa0] sm:$0xff]
  %v114 = vld [vmem:[%s3 + $0xa8] sm:$0xff]
  %v115 = vld [vmem:[%s3 + $0xb0] sm:$0xff]
  %v116 = vld [vmem:[%s3 + $0xb8] sm:$0xff]
  %v117 = vld [vmem:[%s3 + $0xc0] sm:$0xff]
  %v118 = vld [vmem:[%s3 + $0xc8] sm:$0xff]
  %v119 = vld [vmem:[%s3 + $0xd0] sm:$0xff]
  %v120 = vld [vmem:[%s3 + $0xd8] sm:$0xff]
  %v121 = vld [vmem:[%s3 + $0xe0] sm:$0xff]
  %v122 = vld [vmem:[%s3 + $0xe8] sm:$0xff]
  %v123 = vld [vmem:[%s3 + $0xf0] sm:$0xff]
  %v124 = vld [vmem:[%s3 + $0xf8] sm:$0xff]
  %v125 = vld [vmem:[%s4] sm:$0x1]
  %v127 = vlaneseq
  %v128 = vshrl.u32 %v127, 7
  %v129 = vsub.s32 0, %v128
  %v130 = vrot.slane %v125, %v129
  %132 = vmatprep.subr.mxu0 0.0
  %133 = vmatpush1.msra.mxu0 %v93
  %134 = vmatprep.subr.mxu0 0.0
  %135 = vmatpush1.msra.mxu0 %v94
  %136 = vmatprep.subr.mxu0 0.0
  %137 = vmatpush1.msra.mxu0 %v95
  %138 = vmatprep.subr.mxu0 0.0
  %139 = vmatpush1.msra.mxu0 %v96
  %140 = vmatprep.subr.mxu0 0.0
  %141 = vmatpush1.msra.mxu0 %v97
  %142 = vmatprep.subr.mxu0 0.0
  %143 = vmatpush1.msra.mxu0 %v98
  %144 = vmatprep.subr.mxu0 0.0
  %145 = vmatpush1.msra.mxu0 %v99
  %146 = vmatprep.subr.mxu0 0.0
  %147 = vmatpush1.msra.mxu0 %v100
  %148 = vmatprep.subr.mxu0 0.0
  %149 = vmatpush1.msra.mxu0 %v101
  %150 = vmatprep.subr.mxu0 0.0
  %151 = vmatpush1.msra.mxu0 %v102
  %152 = vmatprep.subr.mxu0 0.0
  %153 = vmatpush1.msra.mxu0 %v103
  %154 = vmatprep.subr.mxu0 0.0
  %155 = vmatpush1.msra.mxu0 %v104
  %156 = vmatprep.subr.mxu0 0.0
  %157 = vmatpush1.msra.mxu0 %v105
  %158 = vmatprep.subr.mxu0 0.0
  %159 = vmatpush1.msra.mxu0 %v106
  %160 = vmatprep.subr.mxu0 0.0
  %161 = vmatpush1.msra.mxu0 %v107
  %162 = vmatprep.subr.mxu0 0.0
  %163 = vmatpush1.msra.mxu0 %v108
  %164 = vmatprep.subr.mxu0 0.0
  %165 = vmatpush1.msra.mxu0 %v109
  %166 = vmatprep.subr.mxu0 0.0
  %167 = vmatpush1.msra.mxu0 %v110
  %168 = vmatprep.subr.mxu0 0.0
  %169 = vmatpush1.msra.mxu0 %v111
  %170 = vmatprep.subr.mxu0 0.0
  %171 = vmatpush1.msra.mxu0 %v112
  %172 = vmatprep.subr.mxu0 0.0
  %173 = vmatpush1.msra.mxu0 %v113
  %174 = vmatprep.subr.mxu0 0.0
  %175 = vmatpush1.msra.mxu0 %v114
  %176 = vmatprep.subr.mxu0 0.0
  %177 = vmatpush1.msra.mxu0 %v115
  %178 = vmatprep.subr.mxu0 0.0
  %179 = vmatpush1.msra.mxu0 %v116
  %180 = vmatprep.subr.mxu0 0.0
  %181 = vmatpush1.msra.mxu0 %v117
  %182 = vmatprep.subr.mxu0 0.0
  %183 = vmatpush1.msra.mxu0 %v118
  %184 = vmatprep.subr.mxu0 0.0
  %185 = vmatpush1.msra.mxu0 %v119
  %186 = vmatprep.subr.mxu0 0.0
  %187 = vmatpush1.msra.mxu0 %v120
  %188 = vmatprep.subr.mxu0 0.0
  %189 = vmatpush1.msra.mxu0 %v121
  %190 = vmatprep.subr.mxu0 0.0
  %191 = vmatpush1.msra.mxu0 %v122
  %192 = vmatprep.subr.mxu0 0.0
  %193 = vmatpush1.msra.mxu0 %v123
  %194 = vmatprep.subr.mxu0 0.0
  %195 = vmatpush1.msra.mxu0 %v124
  %196 = vmatprep.mubr.f32.mxu0 %v92
  %197 = vmatmul.mubr.f32.gmra.mrb[0].mxu0 %v91
  %v198 = vpop.f32.mrb[0].mxu0
  %v199 = vadd.f32 %v130, %v198
  %v200 = vpop.f32.mrb[0].mxu0
  %201 = vdwg.mxu0
  %vm202 = vcmask 15360
  %203 = vst.msk [vmem:[%s5] sm:$0xff] %vm202, %v199
  // Predicated region
  $region22: #{tpu_custom_call.1} parent=0 // pred_check
    _
  $region23: #{tpu_custom_call.1} parent=0 // pred_check_branch
    %205 = sbr.rel (0) target = $region25
  $region24: #{tpu_custom_call.1} parent=0 // pred_region
    _
  $region25: #{tpu_custom_call.1} parent=0 // pred_fallthru
    _
  // Predicated region
  $region26: #{tpu_custom_call.1} parent=0 // pred_check
    _
  $region27: #{tpu_custom_call.1} parent=0 // pred_check_branch
    %207 = sbr.rel (0) target = $region29
  $region28: #{tpu_custom_call.1} parent=0 // pred_region
    _
  $region29: #{tpu_custom_call.1} parent=0 // pred_fallthru
    _

</llo_original>
